<compile_context>
chip_gen: v7x
topology: tpu7x:2x2x1
jax: 0.10.0
libtpu: 0.0.40
codegen_flags: <defaults>
</compile_context>

<pallas_src>
import functools
import math

import jax
import jax.numpy as jnp
from jax.experimental import pallas as pl
from jax.experimental.pallas import tpu as pltpu


def _round_up(x, m):
    return (x + m - 1) // m * m


def _vmem_limit(need_bytes):
    # Scoped-VMEM limit from the actual tile footprint + headroom, clamped so
    # it is valid on v5e/v6e (128 MiB physical) and v7x (64 MiB physical).
    return int(min(max(32 << 20, int(1.25 * need_bytes) + (2 << 20)), 64 << 20))


def _rbf_resident_kernel(x_ref, wt_ref, xxp_ref, wwp_ref, o_ref, *,
                         two_inv_gamma, log_scale):
    # x: (TB, D), wt: (D, C_pad) -- weight & wwp are VMEM-resident (constant
    # block index) across the whole 1-D batch grid.
    xw = jnp.dot(x_ref[...], wt_ref[...], preferred_element_type=jnp.float32)
    expo = xxp_ref[...] + wwp_ref[...] + two_inv_gamma * xw
    expo = jnp.minimum(expo, log_scale)        # == metric >= 0 guard
    o_ref[...] = jnp.exp(expo).astype(o_ref.dtype)


def _rbf_tiled_kernel(x_ref, wt_ref, xxp_ref, wwp_ref, o_ref, acc_ref, *,
                      two_inv_gamma, log_scale):
    # x: (TB, TK), wt: (TK, TC); K (reduction) is the last grid axis.
    k = pl.program_id(2)

    @pl.when(k == 0)
    def _():
        acc_ref[...] = jnp.zeros_like(acc_ref)

    acc_ref[...] += jnp.dot(x_ref[...], wt_ref[...],
                            preferred_element_type=jnp.float32)

    @pl.when(k == pl.num_programs(2) - 1)
    def _():
        expo = xxp_ref[...] + wwp_ref[...] + two_inv_gamma * acc_ref[...]
        expo = jnp.minimum(expo, log_scale)    # == metric >= 0 guard
        o_ref[...] = jnp.exp(expo).astype(o_ref.dtype)


def rbf_logits(embeds, weight, *, scale, gamma,
               tile_b=None, tile_c=256, max_tile_k=1024,
               weight_resident=None):
    """scale * exp(-||embeds[:,None,:] - weight[None,:,:]||^2 / gamma)."""
    B, D = embeds.shape
    C, Dw = weight.shape
    assert D == Dw, "embedding dim mismatch"

    # Explicit, documented choice: matmul operands share the embedding dtype
    # (bf16 embeds => bf16 weight on the MXU).  Norms / accumulator stay f32.
    weight = weight.astype(embeds.dtype)
    out_dtype = embeds.dtype
    itemsize = jnp.dtype(out_dtype).itemsize
    sublane = 8 if itemsize >= 4 else 16

    inv_gamma = 1.0 / float(gamma)
    log_scale = math.log(float(scale))
    two_inv_gamma = 2.0 * inv_gamma

    # Hoisted, constant-folded norm terms (f32, computed once):
    #   exponent = (log(scale) - ||x||^2/g) + (-||w||^2/g) + (2/g) * x.w
    xxp = log_scale - inv_gamma * jnp.sum(
        embeds.astype(jnp.float32) ** 2, axis=-1, keepdims=True)         # (B, 1)
    wwp = (-inv_gamma * jnp.sum(
        weight.astype(jnp.float32) ** 2, axis=-1, keepdims=True)).T      # (1, C)

    # MXU-native RHS layout: (D, C), classes on the 128-lane axis.
    wt = weight.T                                                         # (D, C)

    C_pad = _round_up(C, 128)
    if C_pad != C:
        # NOTE: padded class columns hold nonzero exp(xxp) values until the
        # final slice below; never feed the padded buffer downstream.
        wt = jnp.pad(wt, ((0, 0), (0, C_pad - C)))
        wwp = jnp.pad(wwp, ((0, 0), (0, C_pad - C)))

    if tile_b is None:
        tile_b = 512 if itemsize < 4 else 256

    # ---------------- weight-resident fast path -----------------------------
    tb_res = _round_up(min(tile_b, _round_up(B, sublane)), sublane)
    res_need = (2 * tb_res * D * itemsize            # x (double-buffered)
                + 2 * D * C_pad * itemsize           # resident weight (x2 conservative)
                + 2 * tb_res * 4 + 2 * C_pad * 4     # norm terms
                + 2 * tb_res * C_pad * itemsize)     # output
    if weight_resident is None:
        weight_resident = (D * C_pad * itemsize <= (8 << 20)
                           and res_need <= (40 << 20))

    if weight_resident:
        tb = tb_res
        B_pad = _round_up(B, tb)
        # Megacore (v7x): give the single parallel axis >= 2 iterations.
        if B_pad // tb == 1 and tb > sublane:
            tb = _round_up((tb + 1) // 2, sublane)
            B_pad = _round_up(B, tb)
        x, xxp_p = embeds, xxp
        if B_pad != B:
            x = jnp.pad(x, ((0, B_pad - B), (0, 0)))
            xxp_p = jnp.pad(xxp_p, ((0, B_pad - B), (0, 0)))

        cost = pl.CostEstimate(
            flops=2 * B_pad * C_pad * D + 3 * B_pad * C_pad,
            transcendentals=B_pad * C_pad,
            bytes_accessed=(B_pad * D + C_pad * D) * itemsize
                           + (B_pad + C_pad) * 4 + B_pad * C_pad * itemsize)

        out = pl.pallas_call(
            functools.partial(_rbf_resident_kernel,
                              two_inv_gamma=two_inv_gamma, log_scale=log_scale),
            out_shape=jax.ShapeDtypeStruct((B_pad, C_pad), out_dtype),
            grid_spec=pltpu.PrefetchScalarGridSpec(
                num_scalar_prefetch=0,
                grid=(B_pad // tb,),
                in_specs=[
                    pl.BlockSpec((tb, D), lambda i: (i, 0)),      # embeds tile
                    pl.BlockSpec((D, C_pad), lambda i: (0, 0)),   # weight: resident
                    pl.BlockSpec((tb, 1), lambda i: (i, 0)),      # xxp tile
                    pl.BlockSpec((1, C_pad), lambda i: (0, 0)),   # wwp: resident
                ],
                out_specs=pl.BlockSpec((tb, C_pad), lambda i: (i, 0)),
            ),
            compiler_params=pltpu.CompilerParams(
                dimension_semantics=("parallel",),
                vmem_limit_bytes=_vmem_limit(res_need)),
            cost_estimate=cost,
        )(x, wt, xxp_p, wwp)
        return out[:B, :C]

    # ---------------- streamed / K-tiled path -------------------------------
    tb = _round_up(min(tile_b, _round_up(B, sublane)), sublane)
    B_pad = _round_up(B, tb)

    tc = max(128, (min(tile_c, C_pad) // 128) * 128)
    C_pad2 = _round_up(C_pad, tc)
    if C_pad2 != C_pad:
        wt = jnp.pad(wt, ((0, 0), (0, C_pad2 - C_pad)))
        wwp = jnp.pad(wwp, ((0, 0), (0, C_pad2 - C_pad)))
        C_pad = C_pad2

    if D <= max_tile_k:
        tk, D_pad = D, D                    # full-dim K block
    else:
        tk = max(128, (max_tile_k // 128) * 128)
        D_pad = _round_up(D, tk)

    x, xxp_p = embeds, xxp
    if B_pad != B or D_pad != D:
        x = jnp.pad(x, ((0, B_pad - B), (0, D_pad - D)))
    if B_pad != B:
        xxp_p = jnp.pad(xxp_p, ((0, B_pad - B), (0, 0)))
    if D_pad != D:
        wt = jnp.pad(wt, ((0, D_pad - D), (0, 0)))

    gb, gc, gk = B_pad // tb, C_pad // tc, D_pad // tk

    # Megacore (v7x): lead with an axis that has >= 2 iterations when possible.
    if gb >= 2 or gc < 2:
        grid = (gb, gc, gk)
        bi, ci = 0, 1
    else:
        grid = (gc, gb, gk)
        bi, ci = 1, 0

    def x_map(*g): return (g[bi], g[2])
    def w_map(*g): return (g[2], g[ci])
    def xx_map(*g): return (g[bi], 0)
    def ww_map(*g): return (0, g[ci])
    def o_map(*g): return (g[bi], g[ci])

    need = (2 * tb * tk * itemsize + 2 * tk * tc * itemsize
            + 2 * tb * 4 + 2 * tc * 4
            + 2 * tb * tc * itemsize + tb * tc * 4)

    cost = pl.CostEstimate(
        flops=2 * B_pad * C_pad * D_pad + 3 * B_pad * C_pad,
        transcendentals=B_pad * C_pad,
        # Count the actual operand re-streaming across the 2-D output tiling.
        bytes_accessed=(gc * B_pad * D_pad + gb * C_pad * D_pad) * itemsize
                       + (B_pad + C_pad) * 4 + B_pad * C_pad * itemsize)

    out = pl.pallas_call(
        functools.partial(_rbf_tiled_kernel,
                          two_inv_gamma=two_inv_gamma, log_scale=log_scale),
        out_shape=jax.ShapeDtypeStruct((B_pad, C_pad), out_dtype),
        grid_spec=pltpu.PrefetchScalarGridSpec(
            num_scalar_prefetch=0,
            grid=grid,
            in_specs=[
                pl.BlockSpec((tb, tk), x_map),     # embeds tile
                pl.BlockSpec((tk, tc), w_map),     # weight tile (pre-transposed)
                pl.BlockSpec((tb, 1), xx_map),     # xxp tile
                pl.BlockSpec((1, tc), ww_map),     # wwp tile
            ],
            out_specs=pl.BlockSpec((tb, tc), o_map),
            scratch_shapes=[pltpu.VMEM((tb, tc), jnp.float32)],
        ),
        compiler_params=pltpu.CompilerParams(
            dimension_semantics=("parallel", "parallel", "arbitrary"),
            vmem_limit_bytes=_vmem_limit(need)),
        cost_estimate=cost,
    )(x, wt, xxp_p, wwp)
    return out[:B, :C]


if __name__ == "__main__":
    # ---- Test 1: small, module-consistent shapes (weight-resident path) ----
    embed_dim = 32
    n_classes = 10
    batch = 16

    scale = 4.0 if n_classes == 10 else 14.0
    gamma = 1.8 if n_classes == 10 else 2.2

    key = jax.random.PRNGKey(0)
    k_w, k_x = jax.random.split(key)

    # Deterministic xavier_uniform_-style init for weight (n_classes, embed_dim).
    limit = (6.0 / (n_classes + embed_dim)) ** 0.5
    weight = jax.random.uniform(k_w, (n_classes, embed_dim),
                                dtype=jnp.float32, minval=-limit, maxval=limit)
    bias = jnp.zeros((n_classes,), dtype=jnp.float32)  # unused in forward  # noqa: F841
    embeds = jax.random.normal(k_x, (batch, embed_dim), dtype=jnp.float32)

    out = jax.block_until_ready(rbf_logits(embeds, weight, scale=scale, gamma=gamma))

    diff = weight[None, :, :] - embeds[:, None, :]
    ref = scale * jnp.exp(-jnp.sum(diff * diff, axis=-1) / gamma)
    assert out.shape == (batch, n_classes)
    assert jnp.allclose(out, ref, atol=1e-4, rtol=1e-4), "mismatch vs reference (resident)"

    # ---- Test 2: force the streamed / K-tiled path (padding on B, C and D) --
    B2, C2, D2 = 96, 300, 160
    k2w, k2x = jax.random.split(jax.random.PRNGKey(1))
    w2 = 0.1 * jax.random.normal(k2w, (C2, D2), dtype=jnp.float32)
    x2 = 0.1 * jax.random.normal(k2x, (B2, D2), dtype=jnp.float32)

    out2 = jax.block_until_ready(
        rbf_logits(x2, w2, scale=14.0, gamma=2.2,
                   weight_resident=False, tile_b=128, tile_c=128, max_tile_k=128))

    d2 = w2[None, :, :] - x2[:, None, :]
    ref2 = 14.0 * jnp.exp(-jnp.sum(d2 * d2, axis=-1) / 2.2)
    assert out2.shape == (B2, C2)
    assert jnp.allclose(out2, ref2, atol=1e-3, rtol=1e-3), "mismatch vs reference (tiled)"

    print("KERNEL_OK")
</pallas_src>

<mosaic_0001>
module attributes {stable_mosaic.version = 11 : i64} {
  func.func @_rbf_resident_kernel(%arg0: i32, %arg1: memref<8x32xf32, #tpu.memory_space<vmem>>, %arg2: memref<32x128xf32, #tpu.memory_space<vmem>>, %arg3: memref<8x1xf32, #tpu.memory_space<vmem>>, %arg4: memref<1x128xf32, #tpu.memory_space<vmem>>, %arg5: memref<8x128xf32, #tpu.memory_space<vmem>>) attributes {dimension_semantics = [#tpu.dimension_semantics<parallel>], iteration_bounds = array<i64: 2>, scalar_prefetch = 0 : i64, scratch_operands = 0 : i64, tpu.core_type = #tpu.core_type<tc>, window_params = [{transform_indices = @transform_0, window_bounds = array<i64: 8, 32>}, {pipeline_mode = #tpu.pipeline_mode<synchronous>, transform_indices = @transform_1, window_bounds = array<i64: 32, 128>}, {transform_indices = @transform_2, window_bounds = array<i64: 8, 1>}, {pipeline_mode = #tpu.pipeline_mode<synchronous>, transform_indices = @transform_3, window_bounds = array<i64: 1, 128>}, {transform_indices = @transform_4, window_bounds = array<i64: 8, 128>}]} {
    %c0 = arith.constant 0 : index
    %c0_0 = arith.constant 0 : index
    %0 = vector.load %arg1[%c0, %c0_0] : memref<8x32xf32, #tpu.memory_space<vmem>>, vector<8x32xf32>
    %c0_1 = arith.constant 0 : index
    %c0_2 = arith.constant 0 : index
    %1 = vector.load %arg2[%c0_1, %c0_2] : memref<32x128xf32, #tpu.memory_space<vmem>>, vector<32x128xf32>
    %cst = arith.constant dense<0.000000e+00> : vector<8x128xf32>
    %2 = tpu.matmul %0, %1, %cst {dimension_numbers = #tpu.dot_dimension_numbers<[1], [0], [0], [1], [0, 0, 1, 1], [], []>} : vector<8x32xf32>, vector<32x128xf32>, vector<8x128xf32> -> vector<8x128xf32>
    %c0_3 = arith.constant 0 : index
    %c0_4 = arith.constant 0 : index
    %3 = vector.load %arg3[%c0_3, %c0_4] : memref<8x1xf32, #tpu.memory_space<vmem>>, vector<8x1xf32>
    %c0_5 = arith.constant 0 : index
    %c0_6 = arith.constant 0 : index
    %4 = vector.load %arg4[%c0_5, %c0_6] : memref<1x128xf32, #tpu.memory_space<vmem>>, vector<1x128xf32>
    %5 = vector.broadcast %3 : vector<8x1xf32> to vector<8x128xf32>
    %6 = vector.broadcast %4 : vector<1x128xf32> to vector<8x128xf32>
    %7 = arith.addf %5, %6 : vector<8x128xf32>
    %cst_7 = arith.constant 1.11111116 : f32
    %8 = vector.broadcast %cst_7 : f32 to vector<8x128xf32>
    %9 = arith.mulf %8, %2 : vector<8x128xf32>
    %10 = arith.addf %7, %9 : vector<8x128xf32>
    %cst_8 = arith.constant 1.38629436 : f32
    %11 = vector.broadcast %cst_8 : f32 to vector<8x128xf32>
    %12 = arith.minimumf %10, %11 : vector<8x128xf32>
    %13 = math.exp %12 : vector<8x128xf32>
    %c0_9 = arith.constant 0 : index
    %c0_10 = arith.constant 0 : index
    %14 = vector.load %arg5[%c0_9, %c0_10] : memref<8x128xf32, #tpu.memory_space<vmem>>, vector<8x128xf32>
    tpu.vector_store %arg5[%c0_9, %c0_10], %13 {strides = array<i32>} : memref<8x128xf32, #tpu.memory_space<vmem>>, vector<8x128xf32>,
    return
  }
  func.func @transform_0(%arg0: i32) -> (i32, i32) {
    %c0_i32 = arith.constant 0 : i32
    %c0_i32_0 = arith.constant 0 : i32
    return %arg0, %c0_i32 : i32, i32
  }
  func.func @transform_1(%arg0: i32) -> (i32, i32) {
    %c0_i32 = arith.constant 0 : i32
    %c0_i32_0 = arith.constant 0 : i32
    %c0_i32_1 = arith.constant 0 : i32
    return %c0_i32, %c0_i32_0 : i32, i32
  }
  func.func @transform_2(%arg0: i32) -> (i32, i32) {
    %c0_i32 = arith.constant 0 : i32
    %c0_i32_0 = arith.constant 0 : i32
    return %arg0, %c0_i32 : i32, i32
  }
  func.func @transform_3(%arg0: i32) -> (i32, i32) {
    %c0_i32 = arith.constant 0 : i32
    %c0_i32_0 = arith.constant 0 : i32
    %c0_i32_1 = arith.constant 0 : i32
    return %c0_i32, %c0_i32_0 : i32, i32
  }
  func.func @transform_4(%arg0: i32) -> (i32, i32) {
    %c0_i32 = arith.constant 0 : i32
    %c0_i32_0 = arith.constant 0 : i32
    return %arg0, %c0_i32 : i32, i32
  }
}

</mosaic_0001>

<llo_original>
// kernel: tpu_custom_call.1
$region0: #{tpu_custom_call.1}
  #allocation0 [shape = 'u32[]', space=smem, size = 0x4, offset = 0x4, fixed_abs, tag = 'smem constant byte address 0x4 - core index']
  #allocation1 [shape = 'u32[144,128]{1,0:T(1,128)}', space=vmem, size = 0x12000, scoped, tag = 'internal scratch']
  %s0 = inlined_call_operand.vmem [shape: f32[16,32], index: 0, kind: input, shape index: {}]
  %s1 = inlined_call_operand.hbm [shape: f32[32,128], index: 1, kind: input, shape index: {}]
  %s2 = inlined_call_operand.vmem [shape: f32[16,1], index: 2, kind: input, shape index: {}]
  %s3 = inlined_call_operand.vmem [shape: f32[1,128], index: 3, kind: input, shape index: {}]
  %s4 = inlined_call_operand.hbm [shape: f32[16,128], index: 4, kind: output, shape index: {}]
  %s5 = sld [smem:[#allocation0]]
  $region53: #{tpu_custom_call.1} parent=0
    _
  %s7 = ssub.s32 1, %s5
  %s8 = scalar_select 0, %s7, %s5
  $region1: #{tpu_custom_call.1} parent=0
    #allocation2 [shape = 'u8[16384]{0}', space=vmem, size = 0x4000, scoped, tag = 'input window, operand 1, single buffered']
    #allocation3 [shape = 's32[2]{0}', space=sflag, size = 0x8, scoped, tag = 'scoped memory for tpu_custom_call.1']
    #allocation4 [shape = 's32[2]{0}', space=sflag, size = 0x8, scoped, tag = 'scoped memory for tpu_custom_call.1']
    #allocation5 [shape = 'u8[8192]{0}', space=vmem, size = 0x2000, scoped, tag = 'output window, operand 0']
    %9 = vsyncpa [#allocation3], 0
    %10 = vsyncpa [#allocation4], 0
    %s11 = scalar_lea.sflag [#allocation4], 1
    %12 = vsyncpa %s11, 0
    loop: start=0, step=1, limit=4
    $region2: #{tpu_custom_call.1} parent=1 // loop_pre_header
      _
    $region3: #{tpu_custom_call.1} parent=1 // loop_header
      %s14 = sphi 0, %s18
      %p15 = scmp.ge.s32.totalorder %s14, 4
      %s24 = sphi 0, %s26
      %s27 = sphi 0, %s24
      %s28 = sphi 0, %s27
      %s44 = sphi 0, %s28
      %s48 = sphi 0, %s48
      %s50 = sphi 0, %s48
      %s51 = sphi 0, %s50
      %s65 = sphi 0, %s51
      %s71 = sphi 0, %s73
      %s74 = sphi 0, %s71
      %s75 = sphi 0, %s74
      %s91 = sphi 0, %s75
      %s95 = sphi 0, %s95
      %s97 = sphi 0, %s95
      %s98 = sphi 0, %s97
      %s112 = sphi 0, %s98
      %s118 = sphi 0, %s120
      %s121 = sphi 0, %s118
      %s122 = sphi 0, %s121
      %s138 = sphi 0, %s122
    $region4: #{tpu_custom_call.1} parent=1 // loop_header_branch
      %17 = sbr.rel (%p15) target = $region8
    $region5: #{tpu_custom_call.1} parent=1 // loop_body
      %s19 = ssub.s32 %s14, 1
      %s20 = ssub.s32 %s14, 2
      %s21 = sadd.s32 %s14, 1
      %s22 = ssub.s32 %s14, %s21
      %p23 = scmp.eq.s32.totalorder %s22, 0
      %s25 = sadd.s32 %s24, 1
      %s26 = scalar_select %p23, %s24, %s25
      %p29 = pneg %p23
      %p30 = scmp.eq.s32.totalorder %s14, 1
      %p31 = por %p29, %p30
      %p32 = scmp.ne.s32.totalorder %s24, %s27
      %p33 = scmp.eq.s32.totalorder %s14, 0
      %p34 = por %p32, %p33
      %p35 = scmp.ne.s32.totalorder %s24, %s27
      %p36 = scmp.eq.s32.totalorder %s19, 1
      %p37 = por %p35, %p36
      %p38 = scmp.ne.s32.totalorder %s27, %s28
      %p39 = scmp.eq.s32.totalorder %s19, 0
      %p40 = por %p38, %p39
      %p41 = scmp.ne.s32.totalorder %s27, %s28
      %p42 = scmp.eq.s32.totalorder %s20, 1
      %p43 = por %p41, %p42
      %p45 = scmp.ne.s32.totalorder %s28, %s44
      %p46 = scmp.eq.s32.totalorder %s20, 0
      %p47 = por %p45, %p46
      %s49 = sadd.s32 %s48, 1
      %p52 = scmp.eq.s32.totalorder %s14, 1
      %p53 = scmp.ne.s32.totalorder %s48, %s50
      %p54 = scmp.eq.s32.totalorder %s14, 0
      %p55 = por %p53, %p54
      %p56 = scmp.ne.s32.totalorder %s48, %s50
      %p57 = scmp.eq.s32.totalorder %s19, 1
      %p58 = por %p56, %p57
      %p59 = scmp.ne.s32.totalorder %s50, %s51
      %p60 = scmp.eq.s32.totalorder %s19, 0
      %p61 = por %p59, %p60
      %p62 = scmp.ne.s32.totalorder %s50, %s51
      %p63 = scmp.eq.s32.totalorder %s20, 1
      %p64 = por %p62, %p63
      %p66 = scmp.ne.s32.totalorder %s51, %s65
      %p67 = scmp.eq.s32.totalorder %s20, 0
      %p68 = por %p66, %p67
      %s69 = ssub.s32 %s14, %s21
      %p70 = scmp.eq.s32.totalorder %s69, 0
      %s72 = sadd.s32 %s71, 1
      %s73 = scalar_select %p70, %s71, %s72
      %p76 = pneg %p70
      %p77 = scmp.eq.s32.totalorder %s14, 1
      %p78 = por %p76, %p77
      %p79 = scmp.ne.s32.totalorder %s71, %s74
      %p80 = scmp.eq.s32.totalorder %s14, 0
      %p81 = por %p79, %p80
      %p82 = scmp.ne.s32.totalorder %s71, %s74
      %p83 = scmp.eq.s32.totalorder %s19, 1
      %p84 = por %p82, %p83
      %p85 = scmp.ne.s32.totalorder %s74, %s75
      %p86 = scmp.eq.s32.totalorder %s19, 0
      %p87 = por %p85, %p86
      %p88 = scmp.ne.s32.totalorder %s74, %s75
      %p89 = scmp.eq.s32.totalorder %s20, 1
      %p90 = por %p88, %p89
      %p92 = scmp.ne.s32.totalorder %s75, %s91
      %p93 = scmp.eq.s32.totalorder %s20, 0
      %p94 = por %p92, %p93
      %s96 = sadd.s32 %s95, 1
      %p99 = scmp.eq.s32.totalorder %s14, 1
      %p100 = scmp.ne.s32.totalorder %s95, %s97
      %p101 = scmp.eq.s32.totalorder %s14, 0
      %p102 = por %p100, %p101
      %p103 = scmp.ne.s32.totalorder %s95, %s97
      %p104 = scmp.eq.s32.totalorder %s19, 1
      %p105 = por %p103, %p104
      %p106 = scmp.ne.s32.totalorder %s97, %s98
      %p107 = scmp.eq.s32.totalorder %s19, 0
      %p108 = por %p106, %p107
      %p109 = scmp.ne.s32.totalorder %s97, %s98
      %p110 = scmp.eq.s32.totalorder %s20, 1
      %p111 = por %p109, %p110
      %p113 = scmp.ne.s32.totalorder %s98, %s112
      %p114 = scmp.eq.s32.totalorder %s20, 0
      %p115 = por %p113, %p114
      %s116 = ssub.s32 %s14, %s21
      %p117 = scmp.eq.s32.totalorder %s116, 0
      %s119 = sadd.s32 %s118, 1
      %s120 = scalar_select %p117, %s118, %s119
      %p123 = pneg %p117
      %p124 = scmp.eq.s32.totalorder %s14, 1
      %p125 = por %p123, %p124
      %p126 = scmp.ne.s32.totalorder %s118, %s121
      %p127 = scmp.eq.s32.totalorder %s14, 0
      %p128 = por %p126, %p127
      %p129 = scmp.ne.s32.totalorder %s118, %s121
      %p130 = scmp.eq.s32.totalorder %s19, 1
      %p131 = por %p129, %p130
      %p132 = scmp.ne.s32.totalorder %s121, %s122
      %p133 = scmp.eq.s32.totalorder %s19, 0
      %p134 = por %p132, %p133
      %p135 = scmp.ne.s32.totalorder %s121, %s122
      %p136 = scmp.eq.s32.totalorder %s20, 1
      %p137 = por %p135, %p136
      %p139 = scmp.ne.s32.totalorder %s122, %s138
      %p140 = scmp.eq.s32.totalorder %s20, 0
      %p141 = por %p139, %p140
      %p142 = scmp.le.s32.totalorder 1, %s14
      %p143 = scmp.lt.s32.totalorder %s14, 3
      %p144 = pnand %p142, %p143
      %p145 = pneg %p144
      // Predicated region
      $region9: #{tpu_custom_call.1} parent=5 // pred_check
        _
      $region10: #{tpu_custom_call.1} parent=5 // pred_check_branch
        %147 = sbr.rel (%p144) target = $region12
      $region11: #{tpu_custom_call.1} parent=5 // pred_region
        %s148 = ssub.s32 %s14, 1
        // Predicated region
        $region13: #{tpu_custom_call.1} parent=11 // pred_check
          %p149 = pneg %p61
        $region14: #{tpu_custom_call.1} parent=11 // pred_check_branch
          %151 = sbr.rel (%p149) target = $region16
        $region15: #{tpu_custom_call.1} parent=11 // pred_region
          %s153 = ssub.s32 512, 512
          %154 = vsyncadd [#allocation3], %s153
          %s155 = sshll.u32 [#allocation2], 4
          %s156 = int_to_ptr.vmem [resolvable:$true] %s155
          %161 = dma.hbm_to_vmem [thread:$0]  %s1, 512, %s156, [#allocation3], 128, 128, 8
        $region16: #{tpu_custom_call.1} parent=11 // pred_fallthru
          _
        // Predicated region
        $region17: #{tpu_custom_call.1} parent=11 // pred_check
          %p162 = pneg %p108
        $region18: #{tpu_custom_call.1} parent=11 // pred_check_branch
          %164 = sbr.rel (%p162) target = $region20
        $region19: #{tpu_custom_call.1} parent=11 // pred_region
          _
        $region20: #{tpu_custom_call.1} parent=11 // pred_fallthru
          _
      $region12: #{tpu_custom_call.1} parent=5 // pred_fallthru
        _
      %p165 = scmp.lt.s32.totalorder %s14, 2
      // Predicated region
      $region21: #{tpu_custom_call.1} parent=5 // pred_check
        %p166 = pneg %p165
      $region22: #{tpu_custom_call.1} parent=5 // pred_check_branch
        %168 = sbr.rel (%p166) target = $region24
      $region23: #{tpu_custom_call.1} parent=5 // pred_region
        // Predicated region
        $region25: #{tpu_custom_call.1} parent=23 // pred_check
          %p169 = pneg %p34
        $region26: #{tpu_custom_call.1} parent=23 // pred_check_branch
          %171 = sbr.rel (%p169) target = $region28
        $region27: #{tpu_custom_call.1} parent=23 // pred_region
          %p172 = scmp.lt.s32.totalorder %s14, 1
          %s173 = scalar_select %p172, %s14, 1
          %s174 = smul.addr %s173, 8
          %s175 = scalar_lea.vmem %s0, %s174
        $region28: #{tpu_custom_call.1} parent=23 // pred_fallthru
          _
        // Predicated region
        $region29: #{tpu_custom_call.1} parent=23 // pred_check
          %p176 = pneg %p81
        $region30: #{tpu_custom_call.1} parent=23 // pred_check_branch
          %178 = sbr.rel (%p176) target = $region32
        $region31: #{tpu_custom_call.1} parent=23 // pred_region
          %p179 = scmp.lt.s32.totalorder %s14, 1
          %s180 = scalar_select %p179, %s14, 1
          %s181 = smul.addr %s180, 8
          %s182 = scalar_lea.vmem %s2, %s181
        $region32: #{tpu_custom_call.1} parent=23 // pred_fallthru
          _
      $region24: #{tpu_custom_call.1} parent=5 // pred_fallthru
        _
      %p183 = scmp.le.s32.totalorder 1, %s14
      %p184 = scmp.lt.s32.totalorder %s14, 3
      %p185 = pnand %p183, %p184
      %p186 = pneg %p185
      // Predicated region
      $region33: #{tpu_custom_call.1} parent=5 // pred_check
        _
      $region34: #{tpu_custom_call.1} parent=5 // pred_check_branch
        %188 = sbr.rel (%p185) target = $region36
      $region35: #{tpu_custom_call.1} parent=5 // pred_region
        %s189 = ssub.s32 %s14, 1
        // Predicated region
        $region37: #{tpu_custom_call.1} parent=35 // pred_check
          %p190 = pneg %p61
        $region38: #{tpu_custom_call.1} parent=35 // pred_check_branch
          %192 = sbr.rel (%p190) target = $region40
        $region39: #{tpu_custom_call.1} parent=35 // pred_region
          %193 = dma.done [#allocation3], 512
        $region40: #{tpu_custom_call.1} parent=35 // pred_fallthru
          _
        %p194 = scmp.lt.s32.totalorder %s19, 1
        %s195 = scalar_select %p194, %s19, 1
        %s196 = smul.addr %s195, 8
        %s197 = scalar_lea.vmem %s0, %s196
        %p198 = pneg %p40
        %p199 = pneg %p37
        %p200 = pneg %p61
        %p201 = pneg %p58
        %p202 = scmp.lt.s32.totalorder %s19, 1
        %s203 = scalar_select %p202, %s19, 1
        %s204 = smul.addr %s203, 8
        %s205 = scalar_lea.vmem %s2, %s204
        %p206 = pneg %p87
        %p207 = pneg %p84
        %p208 = pneg %p108
        %p209 = pneg %p105
        %p210 = pneg %p134
        %p211 = pneg %p131
        %s212 = sand.u32 %s121, 1
        %s213 = scalar_lea.sflag [#allocation4], %s212
        %s214 = sand.u32 %s121, 1
        %s215 = smul.addr %s214, 8
        %s216 = scalar_lea.vmem [#allocation5], %s215
        %p217 = scmp.lt.s32.totalorder %s19, 1
        %s218 = scalar_select %p217, %s19, 1
        %s219 = smul.addr %s218, 8
        %s220 = scalar_lea.vmem %s0, %s219
        %p221 = scmp.lt.s32.totalorder %s19, 1
        %s222 = scalar_select %p221, %s19, 1
        %s223 = smul.addr %s222, 8
        %s224 = scalar_lea.vmem %s2, %s223
        %v225 = vld [vmem:[%s220] sm:$0xff]
        %v226 = vld [vmem:[#allocation2] sm:$0xff]
        %v227 = vld [vmem:[#allocation2 + $0x8] sm:$0xff]
        %v228 = vld [vmem:[#allocation2 + $0x10] sm:$0xff]
        %v229 = vld [vmem:[#allocation2 + $0x18] sm:$0xff]
        %vm230 = vcmask 261120
        %v232 = vsel %vm230, %v225, 0
        %234 = vmatprep.subr.mxu0 0.0
        %235 = vmatpush1.msra.mxu0 %v226
        %236 = vmatprep.subr.mxu0 0.0
        %237 = vmatpush1.msra.mxu0 %v227
        %238 = vmatprep.subr.mxu0 0.0
        %239 = vmatpush1.msra.mxu0 %v228
        %240 = vmatprep.subr.mxu0 0.0
        %241 = vmatpush1.msra.mxu0 %v229
        %242 = vmatprep.subr.mxu0 0.0
        %243 = vmatpush1.msra.mxu0 0.0
        %244 = vmatprep.subr.mxu0 0.0
        %245 = vmatpush1.msra.mxu0 0.0
        %246 = vmatprep.subr.mxu0 0.0
        %247 = vmatpush1.msra.mxu0 0.0
        %248 = vmatprep.subr.mxu0 0.0
        %249 = vmatpush1.msra.mxu0 0.0
        %250 = vmatprep.subr.mxu0 0.0
        %251 = vmatpush1.msra.mxu0 0.0
        %252 = vmatprep.subr.mxu0 0.0
        %253 = vmatpush1.msra.mxu0 0.0
        %254 = vmatprep.subr.mxu0 0.0
        %255 = vmatpush1.msra.mxu0 0.0
        %256 = vmatprep.subr.mxu0 0.0
        %257 = vmatpush1.msra.mxu0 0.0
        %258 = vmatprep.subr.mxu0 0.0
        %259 = vmatpush1.msra.mxu0 0.0
        %260 = vmatprep.subr.mxu0 0.0
        %261 = vmatpush1.msra.mxu0 0.0
        %262 = vmatprep.subr.mxu0 0.0
        %263 = vmatpush1.msra.mxu0 0.0
        %264 = vmatprep.subr.mxu0 0.0
        %265 = vmatpush1.msra.mxu0 0.0
        %266 = vmatprep.subr.mxu0 0.0
        %267 = vmatpush1.msra.mxu0 0.0
        %268 = vmatprep.subr.mxu0 0.0
        %269 = vmatpush1.msra.mxu0 0.0
        %270 = vmatprep.subr.mxu0 0.0
        %271 = vmatpush1.msra.mxu0 0.0
        %272 = vmatprep.subr.mxu0 0.0
        %273 = vmatpush1.msra.mxu0 0.0
        %274 = vmatprep.subr.mxu0 0.0
        %275 = vmatpush1.msra.mxu0 0.0
        %276 = vmatprep.subr.mxu0 0.0
        %277 = vmatpush1.msra.mxu0 0.0
        %278 = vmatprep.subr.mxu0 0.0
        %279 = vmatpush1.msra.mxu0 0.0
        %280 = vmatprep.subr.mxu0 0.0
        %281 = vmatpush1.msra.mxu0 0.0
        %282 = vmatprep.subr.mxu0 0.0
        %283 = vmatpush1.msra.mxu0 0.0
        %284 = vmatprep.subr.mxu0 0.0
        %285 = vmatpush1.msra.mxu0 0.0
        %286 = vmatprep.subr.mxu0 0.0
        %287 = vmatpush1.msra.mxu0 0.0
        %288 = vmatprep.subr.mxu0 0.0
        %289 = vmatpush1.msra.mxu0 0.0
        %290 = vmatprep.subr.mxu0 0.0
        %291 = vmatpush1.msra.mxu0 0.0
        %292 = vmatprep.subr.mxu0 0.0
        %293 = vmatpush1.msra.mxu0 0.0
        %294 = vmatprep.subr.mxu0 0.0
        %295 = vmatpush1.msra.mxu0 0.0
        %296 = vmatprep.subr.mxu0 0.0
        %297 = vmatpush1.msra.mxu0 0.0
        %298 = vmatprep.mubr.f32.mxu0 0.0
        %299 = vmatmul.mubr.f32.gmra.mrb[0].mxu0 %v232
        %v300 = vpop.f32.mrb[0].mxu0
        %v301 = vadd.f32 0.0, %v300
        %v302 = vpop.f32.mrb[0].mxu0
        %303 = vdwg.mxu0
        %v304 = vld [vmem:[%s224] sm:$0xff]
        %v305 = vld [vmem:[%s3] sm:$0x1]
        %307 = vset.pattern.permute.xlu0 0
        %308 = vperm.xlu0 %307, %v304
        %v309 = vpop.permute.xlu0 %308
        %v312 = vlaneseq
        %v313 = vshrl.u32 %v312, 7
        %v314 = vsub.s32 0, %v313
        %v315 = vrot.slane %v305, %v314
        %v317 = vadd.f32 %v309, %v315
        %v318 = vmul.f32 %v301, 1.1111112
        %v319 = vadd.f32 %v317, %v318
        %v320 = vmin.f32 %v319, 1.3862944
        %v321 = vmul.f32 %v320, 1.442695
        %v322 = vpow.pop %v321
        %323 = vst [vmem:[%s216] sm:$0xff] %v322
        %s324 = sand.u32 %s121, 1
        %s325 = scalar_lea.sflag [#allocation4], %s324
        %s326 = sand.u32 %s121, 1
        %s327 = smul.addr %s326, 8
        %s328 = scalar_lea.vmem [#allocation5], %s327
        // Predicated region
        $region41: #{tpu_custom_call.1} parent=35 // pred_check
          %p329 = pneg %p131
        $region42: #{tpu_custom_call.1} parent=35 // pred_check_branch
          %331 = sbr.rel (%p329) target = $region44
        $region43: #{tpu_custom_call.1} parent=35 // pred_region
          %s333 = ssub.s32 128, 128
          %334 = vsyncadd %s325, %s333
          %s335 = smul.addr %s19, 128
          %s336 = scalar_lea.hbm %s4, %s335
          %s338 = sshll.u32 %s328, 4
          %s339 = int_to_ptr.vmem [resolvable:$true] %s338
          %341 = dma.vmem_to_hbm [thread:$0]  %s339, 128, %s336, %s325
        $region44: #{tpu_custom_call.1} parent=35 // pred_fallthru
          _
      $region36: #{tpu_custom_call.1} parent=5 // pred_fallthru
        _
      %p342 = scmp.le.s32.totalorder 2, %s14
      // Predicated region
      $region45: #{tpu_custom_call.1} parent=5 // pred_check
        %p343 = pneg %p342
      $region46: #{tpu_custom_call.1} parent=5 // pred_check_branch
        %345 = sbr.rel (%p343) target = $region48
      $region47: #{tpu_custom_call.1} parent=5 // pred_region
        %s346 = ssub.s32 %s14, 2
        // Predicated region
        $region49: #{tpu_custom_call.1} parent=47 // pred_check
          %p347 = pneg %p137
        $region50: #{tpu_custom_call.1} parent=47 // pred_check_branch
          %349 = sbr.rel (%p347) target = $region52
        $region51: #{tpu_custom_call.1} parent=47 // pred_region
          %s350 = sand.u32 %s122, 1
          %s351 = scalar_lea.sflag [#allocation4], %s350
          %s352 = sand.u32 %s122, 1
          %s353 = smul.addr %s352, 8
          %s354 = scalar_lea.vmem [#allocation5], %s353
          %355 = dma.done %s351, 128
        $region52: #{tpu_custom_call.1} parent=47 // pred_fallthru
          _
      $region48: #{tpu_custom_call.1} parent=5 // pred_fallthru
        _
    $region6: #{tpu_custom_call.1} parent=1 // loop_footer
      %s18 = sadd.s32 1, %s14
    $region7: #{tpu_custom_call.1} parent=1 // loop_footer_branch
      %13 = sbr.rel target = $region3
    $region8: #{tpu_custom_call.1} parent=1 // loop_exit
      _
    %356 = vsyncpa [#allocation3], 1
    %s357 = scalar_lea.sflag [#allocation3], 1
    %358 = vsyncpa %s357, 1
    %359 = vsyncpa [#allocation4], 1
    %s360 = scalar_lea.sflag [#allocation4], 1
    %361 = vsyncpa %s360, 1

</llo_original>
